<compile_context>
chip_gen: v6e
topology: v6e:2x2x1
jax: 0.10.0
libtpu: 0.0.40
codegen_flags: <defaults>
</compile_context>

<pallas_src>
import jax
import jax.numpy as jnp
from jax.experimental import pallas as pl
from jax.experimental.pallas import tpu as pltpu


def _round_up(x, m):
    return ((x + m - 1) // m) * m


def _choose_tk(d_pad128, max_tk):
    """Largest multiple of 128 that divides d_pad128 and is <= max_tk."""
    n = d_pad128 // 128
    best = 1
    for d in range(1, n + 1):
        if n % d == 0 and d * 128 <= max_tk:
            best = d
    return best * 128


def classifier_head_kernel(x_ref, w1_ref, b1_ref, w2_ref, b2_ref, out_ref, h_acc):
    """Fused Linear -> ReLU -> (Dropout: identity in eval) -> Linear -> LogSoftmax.

    Grid: (batch tiles ["parallel"], K tiles over input_units ["arbitrary"]).
    h_acc is an f32 VMEM accumulator for the first matmul, resident across the
    K axis; the tail of the head runs only on the last K step.
    """
    k = pl.program_id(1)

    @pl.when(k == 0)
    def _init():
        h_acc[...] = jnp.zeros_like(h_acc)

    # First Linear: bf16 x-tile @ bf16 W1-tile on the MXU, f32 accumulation.
    h_acc[...] += jnp.dot(x_ref[...], w1_ref[...],
                          preferred_element_type=jnp.float32)

    @pl.when(k == pl.num_programs(1) - 1)
    def _finalize():
        # Bias + ReLU (VPU, f32), staged back through the VMEM accumulator to
        # keep vreg pressure bounded in the epilogue.  Dropout: identity (eval).
        h_acc[...] = jnp.maximum(h_acc[...] + b1_ref[...], 0.0)
        # Second Linear + bias.  Padded output lanes carry a -1e30 bias so they
        # never win the max and contribute exp() == 0 to the normalizer.
        logits = jnp.dot(h_acc[...].astype(w2_ref.dtype), w2_ref[...],
                         preferred_element_type=jnp.float32) + b2_ref[...]
        # Numerically-stable log-softmax along dim=1 (lane-axis reduction).
        m = jnp.max(logits, axis=-1, keepdims=True)
        lse = jnp.log(jnp.sum(jnp.exp(logits - m), axis=-1, keepdims=True)) + m
        out_ref[...] = (logits - lse).astype(out_ref.dtype)


def prepare_classifier_params(w1, b1, w2, b2, *, weight_dtype=jnp.bfloat16):
    """One-time padding + bf16 cast of the frozen head parameters.

    w1: (D, H), b1: (1, H) or (H,)   -- first Linear, stored as (in, out)
    w2: (H, O), b2: (1, O) or (O,)   -- second Linear
    """
    D, H = w1.shape
    H2, O = w2.shape
    assert H2 == H

    D_pad = _round_up(D, 128)
    H_pad = _round_up(H, 128)
    O_pad = _round_up(O, 128)

    w1_p = jnp.zeros((D_pad, H_pad), weight_dtype).at[:D, :H].set(
        w1.astype(weight_dtype))
    b1_p = jnp.zeros((1, H_pad), jnp.float32).at[:, :H].set(
        b1.astype(jnp.float32).reshape(1, -1))
    w2_p = jnp.zeros((H_pad, O_pad), weight_dtype).at[:H, :O].set(
        w2.astype(weight_dtype))
    # Padded class lanes get a huge negative bias: exp() underflows to exactly
    # 0 in f32, so log-softmax over the real classes is unchanged.
    b2_p = jnp.full((1, O_pad), -1e30, jnp.float32).at[:, :O].set(
        b2.astype(jnp.float32).reshape(1, -1))

    return {"w1": w1_p, "b1": b1_p, "w2": w2_p, "b2": b2_p,
            "D": D, "H": H, "O": O}


def classifier_forward(x, params, *, block_b=256, max_block_k=3584,
                       vmem_limit_bytes=None):
    """Run the classifier head Pallas kernel.

    x      : (B, D) float32 (or bf16) feature vectors (flattened VGG16 features)
    params : output of prepare_classifier_params (frozen, pre-padded weights)
    returns (B, O) float32 log-probabilities (LogSoftmax output).
    """
    w1_p, b1_p, w2_p, b2_p = params["w1"], params["b1"], params["w2"], params["b2"]
    D, H, O = params["D"], params["H"], params["O"]

    B, D_x = x.shape
    assert D_x == D
    D_pad, H_pad = w1_p.shape
    O_pad = w2_p.shape[1]

    # K tile: exact divisor of the padded contraction dim (no wasted K columns).
    tk = _choose_tk(D_pad, max_block_k)

    # Batch tiling: large tiles for w1 reuse / MXU fill, but keep >= 2 tiles
    # for moderate B so the "parallel" axis can shard across v7x's 2 TCs.
    if B > block_b:
        block_b_eff = block_b
    elif B >= 16:
        block_b_eff = _round_up((B + 1) // 2, 8)
    else:
        block_b_eff = _round_up(max(B, 1), 8)
    B_pad = _round_up(B, block_b_eff)

    # Stream x in bf16 (same dtype as the weights): half the HBM traffic and no
    # per-step cast inside the kernel.  Zero padding is exact for the matmuls.
    x_p = jnp.zeros((B_pad, D_pad), w1_p.dtype).at[:B, :D].set(
        x.astype(w1_p.dtype))

    grid = (B_pad // block_b_eff, D_pad // tk)

    if vmem_limit_bytes is None:
        isz = jnp.dtype(w1_p.dtype).itemsize
        est = 2 * (block_b_eff * tk * isz            # x tile (double-buffered)
                   + tk * H_pad * isz                # w1 K-tile
                   + H_pad * 4                       # b1
                   + H_pad * O_pad * isz             # w2
                   + O_pad * 4                       # b2
                   + block_b_eff * O_pad * 4)        # out tile
        est += block_b_eff * H_pad * 4               # h_acc scratch
        # Headroom, but never above v7x's 64 MiB-per-TC physical VMEM.
        vmem_limit_bytes = int(min(max(32 * 2**20, 2 * est), 64 * 2**20))

    out_p = pl.pallas_call(
        classifier_head_kernel,
        out_shape=jax.ShapeDtypeStruct((B_pad, O_pad), jnp.float32),
        grid_spec=pltpu.PrefetchScalarGridSpec(
            num_scalar_prefetch=0,
            grid=grid,
            in_specs=[
                pl.BlockSpec((block_b_eff, tk), lambda i, k: (i, k)),  # x tile
                pl.BlockSpec((tk, H_pad), lambda i, k: (k, 0)),        # w1 K-tile
                pl.BlockSpec((1, H_pad), lambda i, k: (0, 0)),         # b1
                pl.BlockSpec((H_pad, O_pad), lambda i, k: (0, 0)),     # w2
                pl.BlockSpec((1, O_pad), lambda i, k: (0, 0)),         # b2
            ],
            out_specs=pl.BlockSpec((block_b_eff, O_pad), lambda i, k: (i, 0)),
            scratch_shapes=[pltpu.VMEM((block_b_eff, H_pad), jnp.float32)],
        ),
        compiler_params=pltpu.CompilerParams(
            dimension_semantics=("parallel", "arbitrary"),
            vmem_limit_bytes=vmem_limit_bytes,
        ),
    )(x_p, w1_p, b1_p, w2_p, b2_p)

    return out_p[:B, :O]


def reference_forward(x, w1, b1, w2, b2):
    """Pure-JAX reference mirroring the kernel's bf16-weight / f32-accum math."""
    xb = x.astype(w1.dtype)
    h = jnp.dot(xb, w1, preferred_element_type=jnp.float32) + b1
    h = jnp.maximum(h, 0.0)
    logits = jnp.dot(h.astype(w2.dtype), w2,
                     preferred_element_type=jnp.float32) + b2
    return jax.nn.log_softmax(logits, axis=1)


if __name__ == "__main__":
    # Small, shape-consistent stand-ins for the real config:
    #   input_units (VGG16: 25088) -> 256
    #   hidden_units (default 512) -> 128
    #   output_units (default 102) -> 102
    B, D, H, O = 16, 256, 128, 102

    key = jax.random.PRNGKey(0)
    kx, k1, kb1, k2, kb2 = jax.random.split(key, 5)

    x = jax.random.normal(kx, (B, D), dtype=jnp.float32)
    # Deterministic synthetic parameter init (uniform, PyTorch-Linear-like scale).
    w1 = jax.random.uniform(k1, (D, H), jnp.float32, -1.0, 1.0) / jnp.sqrt(D)
    b1 = jax.random.uniform(kb1, (1, H), jnp.float32, -1.0, 1.0) / jnp.sqrt(D)
    w2 = jax.random.uniform(k2, (H, O), jnp.float32, -1.0, 1.0) / jnp.sqrt(H)
    b2 = jax.random.uniform(kb2, (1, O), jnp.float32, -1.0, 1.0) / jnp.sqrt(H)

    # One-time frozen-parameter preparation (hoisted out of the forward path).
    params = prepare_classifier_params(w1, b1, w2, b2)

    out = classifier_forward(x, params)
    out = jax.block_until_ready(out)

    ref = reference_forward(x, w1.astype(jnp.bfloat16), b1,
                            w2.astype(jnp.bfloat16), b2)
    assert out.shape == (B, O)
    assert jnp.allclose(out, ref, atol=5e-3, rtol=5e-3), "mismatch vs reference"
    # Log-softmax rows must sum to ~1 in probability space (padding did not leak).
    assert jnp.allclose(jnp.sum(jnp.exp(out), axis=1), 1.0, atol=1e-3)

    print("KERNEL_OK")
</pallas_src>

<mosaic_0001>
module attributes {stable_mosaic.version = 11 : i64} {
  func.func @classifier_head_kernel(%arg0: i32, %arg1: i32, %arg2: memref<8x256xbf16, #tpu.memory_space<vmem>>, %arg3: memref<256x128xbf16, #tpu.memory_space<vmem>>, %arg4: memref<1x128xf32, #tpu.memory_space<vmem>>, %arg5: memref<128x128xbf16, #tpu.memory_space<vmem>>, %arg6: memref<1x128xf32, #tpu.memory_space<vmem>>, %arg7: memref<8x128xf32, #tpu.memory_space<vmem>>, %arg8: memref<8x128xf32, #tpu.memory_space<vmem>>) attributes {dimension_semantics = [#tpu.dimension_semantics<parallel>, #tpu.dimension_semantics<arbitrary>], iteration_bounds = array<i64: 2, 1>, scalar_prefetch = 0 : i64, scratch_operands = 1 : i64, tpu.core_type = #tpu.core_type<tc>, window_params = [{transform_indices = @transform_0, window_bounds = array<i64: 8, 256>}, {transform_indices = @transform_1, window_bounds = array<i64: 256, 128>}, {pipeline_mode = #tpu.pipeline_mode<synchronous>, transform_indices = @transform_2, window_bounds = array<i64: 1, 128>}, {pipeline_mode = #tpu.pipeline_mode<synchronous>, transform_indices = @transform_3, window_bounds = array<i64: 128, 128>}, {pipeline_mode = #tpu.pipeline_mode<synchronous>, transform_indices = @transform_4, window_bounds = array<i64: 1, 128>}, {transform_indices = @transform_5, window_bounds = array<i64: 8, 128>}]} {
    %c0_i32 = arith.constant 0 : i32
    %0 = arith.cmpi eq, %arg1, %c0_i32 : i32
    %1 = arith.extui %0 : i1 to i32
    %c0_i32_0 = arith.constant 0 : i32
    %2 = arith.cmpi ne, %1, %c0_i32_0 : i32
    scf.if %2 {
      %cst_10 = arith.constant 0.000000e+00 : f32
      %12 = vector.broadcast %cst_10 : f32 to vector<8x128xf32>
      %c0_11 = arith.constant 0 : index
      %c0_12 = arith.constant 0 : index
      %13 = vector.load %arg8[%c0_11, %c0_12] : memref<8x128xf32, #tpu.memory_space<vmem>>, vector<8x128xf32>
      tpu.vector_store %arg8[%c0_11, %c0_12], %12 {strides = array<i32>} : memref<8x128xf32, #tpu.memory_space<vmem>>, vector<8x128xf32>,
    } else {
    }
    %c0 = arith.constant 0 : index
    %c0_1 = arith.constant 0 : index
    %3 = vector.load %arg8[%c0, %c0_1] : memref<8x128xf32, #tpu.memory_space<vmem>>, vector<8x128xf32>
    %c0_2 = arith.constant 0 : index
    %c0_3 = arith.constant 0 : index
    %4 = vector.load %arg2[%c0_2, %c0_3] : memref<8x256xbf16, #tpu.memory_space<vmem>>, vector<8x256xbf16>
    %c0_4 = arith.constant 0 : index
    %c0_5 = arith.constant 0 : index
    %5 = vector.load %arg3[%c0_4, %c0_5] : memref<256x128xbf16, #tpu.memory_space<vmem>>, vector<256x128xbf16>
    %cst = arith.constant dense<0.000000e+00> : vector<8x128xf32>
    %6 = tpu.matmul %4, %5, %cst {dimension_numbers = #tpu.dot_dimension_numbers<[1], [0], [0], [1], [0, 0, 1, 1], [], []>} : vector<8x256xbf16>, vector<256x128xbf16>, vector<8x128xf32> -> vector<8x128xf32>
    %7 = arith.addf %3, %6 : vector<8x128xf32>
    %c0_6 = arith.constant 0 : index
    %c0_7 = arith.constant 0 : index
    %8 = vector.load %arg8[%c0_6, %c0_7] : memref<8x128xf32, #tpu.memory_space<vmem>>, vector<8x128xf32>
    tpu.vector_store %arg8[%c0_6, %c0_7], %7 {strides = array<i32>} : memref<8x128xf32, #tpu.memory_space<vmem>>, vector<8x128xf32>,
    %c0_i32_8 = arith.constant 0 : i32
    %9 = arith.cmpi eq, %arg1, %c0_i32_8 : i32
    %10 = arith.extui %9 : i1 to i32
    %c0_i32_9 = arith.constant 0 : i32
    %11 = arith.cmpi ne, %10, %c0_i32_9 : i32
    scf.if %11 {
      %c0_10 = arith.constant 0 : index
      %c0_11 = arith.constant 0 : index
      %12 = vector.load %arg8[%c0_10, %c0_11] : memref<8x128xf32, #tpu.memory_space<vmem>>, vector<8x128xf32>
      %c0_12 = arith.constant 0 : index
      %c0_13 = arith.constant 0 : index
      %13 = vector.load %arg4[%c0_12, %c0_13] : memref<1x128xf32, #tpu.memory_space<vmem>>, vector<1x128xf32>
      %14 = vector.broadcast %13 : vector<1x128xf32> to vector<8x128xf32>
      %15 = arith.addf %12, %14 : vector<8x128xf32>
      %cst_14 = arith.constant 0.000000e+00 : f32
      %16 = vector.broadcast %cst_14 : f32 to vector<8x128xf32>
      %17 = arith.maximumf %15, %16 : vector<8x128xf32>
      %c0_15 = arith.constant 0 : index
      %c0_16 = arith.constant 0 : index
      %18 = vector.load %arg8[%c0_15, %c0_16] : memref<8x128xf32, #tpu.memory_space<vmem>>, vector<8x128xf32>
      tpu.vector_store %arg8[%c0_15, %c0_16], %17 {strides = array<i32>} : memref<8x128xf32, #tpu.memory_space<vmem>>, vector<8x128xf32>,
      %c0_17 = arith.constant 0 : index
      %c0_18 = arith.constant 0 : index
      %19 = vector.load %arg8[%c0_17, %c0_18] : memref<8x128xf32, #tpu.memory_space<vmem>>, vector<8x128xf32>
      %20 = arith.truncf %19 : vector<8x128xf32> to vector<8x128xbf16>
      %c0_19 = arith.constant 0 : index
      %c0_20 = arith.constant 0 : index
      %21 = vector.load %arg5[%c0_19, %c0_20] : memref<128x128xbf16, #tpu.memory_space<vmem>>, vector<128x128xbf16>
      %cst_21 = arith.constant dense<0.000000e+00> : vector<8x128xf32>
      %22 = tpu.matmul %20, %21, %cst_21 {dimension_numbers = #tpu.dot_dimension_numbers<[1], [0], [0], [1], [0, 0, 1, 1], [], []>} : vector<8x128xbf16>, vector<128x128xbf16>, vector<8x128xf32> -> vector<8x128xf32>
      %c0_22 = arith.constant 0 : index
      %c0_23 = arith.constant 0 : index
      %23 = vector.load %arg6[%c0_22, %c0_23] : memref<1x128xf32, #tpu.memory_space<vmem>>, vector<1x128xf32>
      %24 = vector.broadcast %23 : vector<1x128xf32> to vector<8x128xf32>
      %25 = arith.addf %22, %24 : vector<8x128xf32>
      %cst_24 = arith.constant dense<0xFF800000> : vector<8xf32>
      %26 = vector.multi_reduction <maximumf>, %25, %cst_24 [1] : vector<8x128xf32> to vector<8xf32>
      %27 = vector.shape_cast %26 : vector<8xf32> to vector<8x1xf32>
      %28 = vector.broadcast %27 : vector<8x1xf32> to vector<8x128xf32>
      %29 = arith.subf %25, %28 : vector<8x128xf32>
      %30 = math.exp %29 : vector<8x128xf32>
      %cst_25 = arith.constant dense<0.000000e+00> : vector<8xf32>
      %31 = vector.multi_reduction <add>, %30, %cst_25 [1] : vector<8x128xf32> to vector<8xf32>
      %32 = vector.shape_cast %31 : vector<8xf32> to vector<8x1xf32>
      %33 = math.log %32 : vector<8x1xf32>
      %34 = arith.addf %33, %27 : vector<8x1xf32>
      %35 = vector.broadcast %34 : vector<8x1xf32> to vector<8x128xf32>
      %36 = arith.subf %25, %35 : vector<8x128xf32>
      %c0_26 = arith.constant 0 : index
      %c0_27 = arith.constant 0 : index
      %37 = vector.load %arg7[%c0_26, %c0_27] : memref<8x128xf32, #tpu.memory_space<vmem>>, vector<8x128xf32>
      tpu.vector_store %arg7[%c0_26, %c0_27], %36 {strides = array<i32>} : memref<8x128xf32, #tpu.memory_space<vmem>>, vector<8x128xf32>,
    } else {
    }
    return
  }
  func.func @transform_0(%arg0: i32, %arg1: i32) -> (i32, i32) {
    %c0_i32 = arith.constant 0 : i32
    return %arg0, %arg1 : i32, i32
  }
  func.func @transform_1(%arg0: i32, %arg1: i32) -> (i32, i32) {
    %c0_i32 = arith.constant 0 : i32
    %c0_i32_0 = arith.constant 0 : i32
    return %arg1, %c0_i32 : i32, i32
  }
  func.func @transform_2(%arg0: i32, %arg1: i32) -> (i32, i32) {
    %c0_i32 = arith.constant 0 : i32
    %c0_i32_0 = arith.constant 0 : i32
    %c0_i32_1 = arith.constant 0 : i32
    return %c0_i32, %c0_i32_0 : i32, i32
  }
  func.func @transform_3(%arg0: i32, %arg1: i32) -> (i32, i32) {
    %c0_i32 = arith.constant 0 : i32
    %c0_i32_0 = arith.constant 0 : i32
    %c0_i32_1 = arith.constant 0 : i32
    return %c0_i32, %c0_i32_0 : i32, i32
  }
  func.func @transform_4(%arg0: i32, %arg1: i32) -> (i32, i32) {
    %c0_i32 = arith.constant 0 : i32
    %c0_i32_0 = arith.constant 0 : i32
    %c0_i32_1 = arith.constant 0 : i32
    return %c0_i32, %c0_i32_0 : i32, i32
  }
  func.func @transform_5(%arg0: i32, %arg1: i32) -> (i32, i32) {
    %c0_i32 = arith.constant 0 : i32
    %c0_i32_0 = arith.constant 0 : i32
    return %arg0, %c0_i32 : i32, i32
  }
}

</mosaic_0001>

<llo_original>
// kernel: tpu_custom_call.1
$region0: #{tpu_custom_call.1}
  #allocation0 [shape = 'u32[]', space=smem, size = 0x4, offset = 0x4, fixed_abs, tag = 'smem constant byte address 0x4 - core index']
  #allocation1 [shape = 'u32[144,128]{1,0:T(1,128)}', space=vmem, size = 0x12000, scoped, tag = 'internal scratch']
  #allocation2 [shape = 'f32[8,128]{1,0:T(8,128)}', space=vmem, size = 0x1000, scoped, tag = 'scratch operand']
  %s0 = inlined_call_operand.hbm [shape: bf16[16,256], index: 0, kind: input, shape index: {}]
  %s1 = inlined_call_operand.hbm [shape: bf16[256,128], index: 1, kind: input, shape index: {}]
  %s2 = inlined_call_operand.vmem [shape: f32[1,128], index: 2, kind: input, shape index: {}]
  %s3 = inlined_call_operand.hbm [shape: bf16[128,128], index: 3, kind: input, shape index: {}]
  %s4 = inlined_call_operand.vmem [shape: f32[1,128], index: 4, kind: input, shape index: {}]
  %s5 = inlined_call_operand.hbm [shape: f32[16,128], index: 5, kind: output, shape index: {}]
  %s6 = sld [smem:[#allocation0]]
  $region73: #{tpu_custom_call.1} parent=0
    _
  %s8 = ssub.s32 1, %s6
  %s9 = scalar_select 0, %s8, %s6
  $region1: #{tpu_custom_call.1} parent=0
    #allocation3 [shape = 'u8[8192]{0}', space=vmem, size = 0x2000, scoped, tag = 'input window, operand 0']
    #allocation4 [shape = 's32[2]{0}', space=sflag, size = 0x8, scoped, tag = 'scoped memory for tpu_custom_call.1']
    #allocation5 [shape = 's32[2]{0}', space=sflag, size = 0x8, scoped, tag = 'scoped memory for tpu_custom_call.1']
    #allocation6 [shape = 'u8[65536]{0}', space=vmem, size = 0x10000, scoped, tag = 'input window, operand 1, single buffered']
    #allocation7 [shape = 's32[1]{0}', space=sflag, size = 0x4, scoped, tag = 'scoped memory for tpu_custom_call.1']
    #allocation8 [shape = 'u8[32768]{0}', space=vmem, size = 0x8000, scoped, tag = 'input window, operand 3, single buffered']
    #allocation9 [shape = 'u8[8192]{0}', space=vmem, size = 0x2000, scoped, tag = 'output window, operand 0']
    %10 = vsyncpa [#allocation4], 0
    %s11 = scalar_lea.sflag [#allocation4], 1
    %12 = vsyncpa %s11, 0
    %13 = vsyncpa [#allocation7], 0
    %14 = vsyncpa [#allocation5], 0
    %s15 = scalar_lea.sflag [#allocation5], 1
    %16 = vsyncpa %s15, 0
    loop: start=0, step=1, limit=4
    $region2: #{tpu_custom_call.1} parent=1 // loop_pre_header
      _
    $region3: #{tpu_custom_call.1} parent=1 // loop_header
      %s18 = sphi 0, %s22
      %p19 = scmp.ge.s32.totalorder %s18, 4
      %s25 = sphi 0, %s37
      %s26 = sphi 0, %s33
      %s27 = sphi 0, %s25
      %s28 = sphi 0, %s26
      %s29 = sphi 0, %s27
      %s30 = sphi 0, %s28
      %s42 = sphi 0, %s44
      %s45 = sphi 0, %s42
      %s46 = sphi 0, %s45
      %s62 = sphi 0, %s46
      %s68 = sphi 0, %s70
      %s71 = sphi 0, %s68
      %s72 = sphi 0, %s71
      %s88 = sphi 0, %s72
      %s92 = sphi 0, %s92
      %s94 = sphi 0, %s92
      %s95 = sphi 0, %s94
      %s109 = sphi 0, %s95
      %s113 = sphi 0, %s113
      %s115 = sphi 0, %s113
      %s116 = sphi 0, %s115
      %s130 = sphi 0, %s116
      %s134 = sphi 0, %s134
      %s136 = sphi 0, %s134
      %s137 = sphi 0, %s136
      %s151 = sphi 0, %s137
      %s157 = sphi 0, %s159
      %s160 = sphi 0, %s157
      %s161 = sphi 0, %s160
      %s177 = sphi 0, %s161
    $region4: #{tpu_custom_call.1} parent=1 // loop_header_branch
      %21 = sbr.rel (%p19) target = $region8
    $region5: #{tpu_custom_call.1} parent=1 // loop_body
      %s23 = ssub.s32 %s18, 1
      %s24 = ssub.s32 %s18, 2
      %s31 = sadd.s32 1, %s26
      %p32 = scmp.ge.s32.totalorder %s31, 1
      %s33 = scalar_select %p32, 0, %s31
      %s34 = sadd.s32 1, %s25
      %s35 = scalar_select %p32, %s34, %s25
      %p36 = scmp.ge.s32.totalorder %s35, 2
      %s37 = scalar_select %p36, 0, %s35
      %s38 = ssub.s32 %s25, %s37
      %s39 = ssub.s32 %s26, %s33
      %s40 = sor.u32 %s38, %s39
      %p41 = scmp.eq.s32.totalorder %s40, 0
      %s43 = sadd.s32 %s42, 1
      %s44 = scalar_select %p41, %s42, %s43
      %p47 = pneg %p41
      %p48 = scmp.eq.s32.totalorder %s18, 1
      %p49 = por %p47, %p48
      %p50 = scmp.ne.s32.totalorder %s42, %s45
      %p51 = scmp.eq.s32.totalorder %s18, 0
      %p52 = por %p50, %p51
      %p53 = scmp.ne.s32.totalorder %s42, %s45
      %p54 = scmp.eq.s32.totalorder %s23, 1
      %p55 = por %p53, %p54
      %p56 = scmp.ne.s32.totalorder %s45, %s46
      %p57 = scmp.eq.s32.totalorder %s23, 0
      %p58 = por %p56, %p57
      %p59 = scmp.ne.s32.totalorder %s45, %s46
      %p60 = scmp.eq.s32.totalorder %s24, 1
      %p61 = por %p59, %p60
      %p63 = scmp.ne.s32.totalorder %s46, %s62
      %p64 = scmp.eq.s32.totalorder %s24, 0
      %p65 = por %p63, %p64
      %s66 = ssub.s32 %s26, %s33
      %p67 = scmp.eq.s32.totalorder %s66, 0
      %s69 = sadd.s32 %s68, 1
      %s70 = scalar_select %p67, %s68, %s69
      %p73 = pneg %p67
      %p74 = scmp.eq.s32.totalorder %s18, 1
      %p75 = por %p73, %p74
      %p76 = scmp.ne.s32.totalorder %s68, %s71
      %p77 = scmp.eq.s32.totalorder %s18, 0
      %p78 = por %p76, %p77
      %p79 = scmp.ne.s32.totalorder %s68, %s71
      %p80 = scmp.eq.s32.totalorder %s23, 1
      %p81 = por %p79, %p80
      %p82 = scmp.ne.s32.totalorder %s71, %s72
      %p83 = scmp.eq.s32.totalorder %s23, 0
      %p84 = por %p82, %p83
      %p85 = scmp.ne.s32.totalorder %s71, %s72
      %p86 = scmp.eq.s32.totalorder %s24, 1
      %p87 = por %p85, %p86
      %p89 = scmp.ne.s32.totalorder %s72, %s88
      %p90 = scmp.eq.s32.totalorder %s24, 0
      %p91 = por %p89, %p90
      %s93 = sadd.s32 %s92, 1
      %p96 = scmp.eq.s32.totalorder %s18, 1
      %p97 = scmp.ne.s32.totalorder %s92, %s94
      %p98 = scmp.eq.s32.totalorder %s18, 0
      %p99 = por %p97, %p98
      %p100 = scmp.ne.s32.totalorder %s92, %s94
      %p101 = scmp.eq.s32.totalorder %s23, 1
      %p102 = por %p100, %p101
      %p103 = scmp.ne.s32.totalorder %s94, %s95
      %p104 = scmp.eq.s32.totalorder %s23, 0
      %p105 = por %p103, %p104
      %p106 = scmp.ne.s32.totalorder %s94, %s95
      %p107 = scmp.eq.s32.totalorder %s24, 1
      %p108 = por %p106, %p107
      %p110 = scmp.ne.s32.totalorder %s95, %s109
      %p111 = scmp.eq.s32.totalorder %s24, 0
      %p112 = por %p110, %p111
      %s114 = sadd.s32 %s113, 1
      %p117 = scmp.eq.s32.totalorder %s18, 1
      %p118 = scmp.ne.s32.totalorder %s113, %s115
      %p119 = scmp.eq.s32.totalorder %s18, 0
      %p120 = por %p118, %p119
      %p121 = scmp.ne.s32.totalorder %s113, %s115
      %p122 = scmp.eq.s32.totalorder %s23, 1
      %p123 = por %p121, %p122
      %p124 = scmp.ne.s32.totalorder %s115, %s116
      %p125 = scmp.eq.s32.totalorder %s23, 0
      %p126 = por %p124, %p125
      %p127 = scmp.ne.s32.totalorder %s115, %s116
      %p128 = scmp.eq.s32.totalorder %s24, 1
      %p129 = por %p127, %p128
      %p131 = scmp.ne.s32.totalorder %s116, %s130
      %p132 = scmp.eq.s32.totalorder %s24, 0
      %p133 = por %p131, %p132
      %s135 = sadd.s32 %s134, 1
      %p138 = scmp.eq.s32.totalorder %s18, 1
      %p139 = scmp.ne.s32.totalorder %s134, %s136
      %p140 = scmp.eq.s32.totalorder %s18, 0
      %p141 = por %p139, %p140
      %p142 = scmp.ne.s32.totalorder %s134, %s136
      %p143 = scmp.eq.s32.totalorder %s23, 1
      %p144 = por %p142, %p143
      %p145 = scmp.ne.s32.totalorder %s136, %s137
      %p146 = scmp.eq.s32.totalorder %s23, 0
      %p147 = por %p145, %p146
      %p148 = scmp.ne.s32.totalorder %s136, %s137
      %p149 = scmp.eq.s32.totalorder %s24, 1
      %p150 = por %p148, %p149
      %p152 = scmp.ne.s32.totalorder %s137, %s151
      %p153 = scmp.eq.s32.totalorder %s24, 0
      %p154 = por %p152, %p153
      %s155 = ssub.s32 %s25, %s37
      %p156 = scmp.eq.s32.totalorder %s155, 0
      %s158 = sadd.s32 %s157, 1
      %s159 = scalar_select %p156, %s157, %s158
      %p162 = pneg %p156
      %p163 = scmp.eq.s32.totalorder %s18, 1
      %p164 = por %p162, %p163
      %p165 = scmp.ne.s32.totalorder %s157, %s160
      %p166 = scmp.eq.s32.totalorder %s18, 0
      %p167 = por %p165, %p166
      %p168 = scmp.ne.s32.totalorder %s157, %s160
      %p169 = scmp.eq.s32.totalorder %s23, 1
      %p170 = por %p168, %p169
      %p171 = scmp.ne.s32.totalorder %s160, %s161
      %p172 = scmp.eq.s32.totalorder %s23, 0
      %p173 = por %p171, %p172
      %p174 = scmp.ne.s32.totalorder %s160, %s161
      %p175 = scmp.eq.s32.totalorder %s24, 1
      %p176 = por %p174, %p175
      %p178 = scmp.ne.s32.totalorder %s161, %s177
      %p179 = scmp.eq.s32.totalorder %s24, 0
      %p180 = por %p178, %p179
      %p181 = scmp.le.s32.totalorder 1, %s18
      %p182 = scmp.lt.s32.totalorder %s18, 3
      %p183 = pnand %p181, %p182
      %p184 = pneg %p183
      // Predicated region
      $region9: #{tpu_custom_call.1} parent=5 // pred_check
        _
      $region10: #{tpu_custom_call.1} parent=5 // pred_check_branch
        %186 = sbr.rel (%p183) target = $region12
      $region11: #{tpu_custom_call.1} parent=5 // pred_region
        %s187 = ssub.s32 %s18, 1
        // Predicated region
        $region13: #{tpu_custom_call.1} parent=11 // pred_check
          %p188 = pneg %p84
        $region14: #{tpu_custom_call.1} parent=11 // pred_check_branch
          %190 = sbr.rel (%p188) target = $region16
        $region15: #{tpu_custom_call.1} parent=11 // pred_region
          %s191 = smul.u32 32, %s28
          %s193 = ssub.s32 2048, 2048
          %194 = vsyncadd [#allocation7], %s193
          %s195 = smul.addr %s191, 64
          %s196 = scalar_lea.hbm %s1, %s195
          %s197 = sshll.u32 [#allocation6], 4
          %s198 = int_to_ptr.vmem [resolvable:$true] %s197
          %203 = dma.hbm_to_vmem [thread:$0]  %s196, 2048, %s198, [#allocation7], 64, 64, 4
        $region16: #{tpu_custom_call.1} parent=11 // pred_fallthru
          _
        // Predicated region
        $region17: #{tpu_custom_call.1} parent=11 // pred_check
          %p204 = pneg %p105
        $region18: #{tpu_custom_call.1} parent=11 // pred_check_branch
          %206 = sbr.rel (%p204) target = $region20
        $region19: #{tpu_custom_call.1} parent=11 // pred_region
          _
        $region20: #{tpu_custom_call.1} parent=11 // pred_fallthru
          _
        // Predicated region
        $region21: #{tpu_custom_call.1} parent=11 // pred_check
          %p207 = pneg %p126
        $region22: #{tpu_custom_call.1} parent=11 // pred_check_branch
          %209 = sbr.rel (%p207) target = $region24
        $region23: #{tpu_custom_call.1} parent=11 // pred_region
          %s211 = ssub.s32 1024, 1024
          %212 = vsyncadd [#allocation7], %s211
          %s213 = sshll.u32 [#allocation8], 4
          %s214 = int_to_ptr.vmem [resolvable:$true] %s213
          %219 = dma.hbm_to_vmem [thread:$0]  %s3, 1024, %s214, [#allocation7], 64, 64, 4
        $region24: #{tpu_custom_call.1} parent=11 // pred_fallthru
          _
        // Predicated region
        $region25: #{tpu_custom_call.1} parent=11 // pred_check
          %p220 = pneg %p147
        $region26: #{tpu_custom_call.1} parent=11 // pred_check_branch
          %222 = sbr.rel (%p220) target = $region28
        $region27: #{tpu_custom_call.1} parent=11 // pred_region
          _
        $region28: #{tpu_custom_call.1} parent=11 // pred_fallthru
          _
      $region12: #{tpu_custom_call.1} parent=5 // pred_fallthru
        _
      %p223 = scmp.lt.s32.totalorder %s18, 2
      // Predicated region
      $region29: #{tpu_custom_call.1} parent=5 // pred_check
        %p224 = pneg %p223
      $region30: #{tpu_custom_call.1} parent=5 // pred_check_branch
        %226 = sbr.rel (%p224) target = $region32
      $region31: #{tpu_custom_call.1} parent=5 // pred_region
        // Predicated region
        $region33: #{tpu_custom_call.1} parent=31 // pred_check
          %p227 = pneg %p52
        $region34: #{tpu_custom_call.1} parent=31 // pred_check_branch
          %229 = sbr.rel (%p227) target = $region36
        $region35: #{tpu_custom_call.1} parent=31 // pred_region
          %s230 = sand.u32 %s42, 1
          %s231 = scalar_lea.sflag [#allocation4], %s230
          %s232 = sand.u32 %s42, 1
          %s233 = smul.addr %s232, 8
          %s234 = scalar_lea.vmem [#allocation3], %s233
          %s235 = smul.u32 2, %s26
          %s237 = ssub.s32 128, 128
          %238 = vsyncadd %s231, %s237
          %s239 = smul.addr %s25, 2
          %s240 = sadd.s32 %s235, %s239
          %s241 = smul.addr %s240, 64
          %s242 = scalar_lea.hbm %s0, %s241
          %s244 = sshll.u32 %s234, 4
          %s245 = int_to_ptr.vmem [resolvable:$true] %s244
          %247 = dma.hbm_to_vmem [thread:$0]  %s242, 128, %s245, %s231
        $region36: #{tpu_custom_call.1} parent=31 // pred_fallthru
          _
      $region32: #{tpu_custom_call.1} parent=5 // pred_fallthru
        _
      %p248 = scmp.le.s32.totalorder 1, %s18
      %p249 = scmp.lt.s32.totalorder %s18, 3
      %p250 = pnand %p248, %p249
      %p251 = pneg %p250
      // Predicated region
      $region37: #{tpu_custom_call.1} parent=5 // pred_check
        _
      $region38: #{tpu_custom_call.1} parent=5 // pred_check_branch
        %253 = sbr.rel (%p250) target = $region40
      $region39: #{tpu_custom_call.1} parent=5 // pred_region
        %s254 = ssub.s32 %s18, 1
        %s255 = sand.u32 %s45, 1
        %s256 = scalar_lea.sflag [#allocation4], %s255
        %s257 = sand.u32 %s45, 1
        %s258 = smul.addr %s257, 8
        %s259 = scalar_lea.vmem [#allocation3], %s258
        // Predicated region
        $region41: #{tpu_custom_call.1} parent=39 // pred_check
          %p260 = pneg %p58
        $region42: #{tpu_custom_call.1} parent=39 // pred_check_branch
          %262 = sbr.rel (%p260) target = $region44
        $region43: #{tpu_custom_call.1} parent=39 // pred_region
          %263 = dma.done %s256, 128
        $region44: #{tpu_custom_call.1} parent=39 // pred_fallthru
          _
        // Predicated region
        $region45: #{tpu_custom_call.1} parent=39 // pred_check
          %p264 = pneg %p84
        $region46: #{tpu_custom_call.1} parent=39 // pred_check_branch
          %266 = sbr.rel (%p264) target = $region48
        $region47: #{tpu_custom_call.1} parent=39 // pred_region
          %267 = dma.done [#allocation7], 2048
        $region48: #{tpu_custom_call.1} parent=39 // pred_fallthru
          _
        // Predicated region
        $region49: #{tpu_custom_call.1} parent=39 // pred_check
          %p268 = pneg %p126
        $region50: #{tpu_custom_call.1} parent=39 // pred_check_branch
          %270 = sbr.rel (%p268) target = $region52
        $region51: #{tpu_custom_call.1} parent=39 // pred_region
          %271 = dma.done [#allocation7], 1024
        $region52: #{tpu_custom_call.1} parent=39 // pred_fallthru
          _
        %s272 = sand.u32 %s45, 1
        %s273 = scalar_lea.sflag [#allocation4], %s272
        %s274 = sand.u32 %s45, 1
        %s275 = smul.addr %s274, 8
        %s276 = scalar_lea.vmem [#allocation3], %s275
        %p277 = pneg %p58
        %p278 = pneg %p55
        %p279 = pneg %p84
        %p280 = pneg %p81
        %p281 = pneg %p105
        %p282 = pneg %p102
        %p283 = pneg %p126
        %p284 = pneg %p123
        %p285 = pneg %p147
        %p286 = pneg %p144
        %p287 = pneg %p173
        %p288 = pneg %p170
        %s289 = sand.u32 %s160, 1
        %s290 = scalar_lea.sflag [#allocation5], %s289
        %s291 = sand.u32 %s160, 1
        %s292 = smul.addr %s291, 8
        %s293 = scalar_lea.vmem [#allocation9], %s292
        %s294 = smul.u32 2, %s28
        %s295 = smul.u32 32, %s28
        %p297 = scmp.eq.s32.totalorder %s28, 0
        // Predicated region
        $region53: #{tpu_custom_call.1} parent=39 // pred_check
          %p298 = pneg %p297
        $region54: #{tpu_custom_call.1} parent=39 // pred_check_branch
          %300 = sbr.rel (%p298) target = $region56
        $region55: #{tpu_custom_call.1} parent=39 // pred_region
          %301 = vst [vmem:[#allocation2] sm:$0xff] 0.0
        $region56: #{tpu_custom_call.1} parent=39 // pred_fallthru
          _
        %v302 = vld [vmem:[#allocation2] sm:$0xff]
        %v303 = vld [vmem:[%s259] sm:$0xff]
        %v304 = vld [vmem:[#allocation6] sm:$0xf]
        %v305 = vld [vmem:[#allocation6 + $0x4] sm:$0xf]
        %v306 = vld [vmem:[#allocation6 + $0x8] sm:$0xf]
        %v307 = vld [vmem:[#allocation6 + $0xc] sm:$0xf]
        %v308 = vld [vmem:[#allocation6 + $0x10] sm:$0xf]
        %v309 = vld [vmem:[#allocation6 + $0x14] sm:$0xf]
        %v310 = vld [vmem:[#allocation6 + $0x18] sm:$0xf]
        %v311 = vld [vmem:[#allocation6 + $0x1c] sm:$0xf]
        %v312 = vld [vmem:[#allocation6 + $0x20] sm:$0xf]
        %v313 = vld [vmem:[#allocation6 + $0x24] sm:$0xf]
        %v314 = vld [vmem:[#allocation6 + $0x28] sm:$0xf]
        %v315 = vld [vmem:[#allocation6 + $0x2c] sm:$0xf]
        %v316 = vld [vmem:[#allocation6 + $0x30] sm:$0xf]
        %v317 = vld [vmem:[#allocation6 + $0x34] sm:$0xf]
        %v318 = vld [vmem:[#allocation6 + $0x38] sm:$0xf]
        %v319 = vld [vmem:[#allocation6 + $0x3c] sm:$0xf]
        %v320 = vld [vmem:[#allocation6 + $0x40] sm:$0xf]
        %v321 = vld [vmem:[#allocation6 + $0x44] sm:$0xf]
        %v322 = vld [vmem:[#allocation6 + $0x48] sm:$0xf]
        %v323 = vld [vmem:[#allocation6 + $0x4c] sm:$0xf]
        %v324 = vld [vmem:[#allocation6 + $0x50] sm:$0xf]
        %v325 = vld [vmem:[#allocation6 + $0x54] sm:$0xf]
        %v326 = vld [vmem:[#allocation6 + $0x58] sm:$0xf]
        %v327 = vld [vmem:[#allocation6 + $0x5c] sm:$0xf]
        %v328 = vld [vmem:[#allocation6 + $0x60] sm:$0xf]
        %v329 = vld [vmem:[#allocation6 + $0x64] sm:$0xf]
        %v330 = vld [vmem:[#allocation6 + $0x68] sm:$0xf]
        %v331 = vld [vmem:[#allocation6 + $0x6c] sm:$0xf]
        %v332 = vld [vmem:[#allocation6 + $0x70] sm:$0xf]
        %v333 = vld [vmem:[#allocation6 + $0x74] sm:$0xf]
        %v334 = vld [vmem:[#allocation6 + $0x78] sm:$0xf]
        %v335 = vld [vmem:[#allocation6 + $0x7c] sm:$0xf]
        %v337 = vunpack.c.l.b16 %v303
        %v338 = vunpack.c.h.b16 %v303
        %v339 = vpack.c.b16 %v337, %v337
        %v340 = vpack.c.b16 %v338, %v338
        %v375 = vunpack.c.l.b16 %v304
        %v376 = vunpack.c.l.b16 %v305
        %v377 = vunpack.c.l.b16 %v306
        %v378 = vunpack.c.l.b16 %v307
        %v379 = vunpack.c.l.b16 %v308
        %v380 = vunpack.c.l.b16 %v309
        %v381 = vunpack.c.l.b16 %v310
        %v382 = vunpack.c.l.b16 %v311
        %v383 = vunpack.c.l.b16 %v312
        %v384 = vunpack.c.l.b16 %v313
        %v385 = vunpack.c.l.b16 %v314
        %v386 = vunpack.c.l.b16 %v315
        %v387 = vunpack.c.l.b16 %v316
        %v388 = vunpack.c.l.b16 %v317
        %v389 = vunpack.c.l.b16 %v318
        %v390 = vunpack.c.l.b16 %v319
        %v391 = vunpack.c.l.b16 %v320
        %v392 = vunpack.c.l.b16 %v321
        %v393 = vunpack.c.l.b16 %v322
        %v394 = vunpack.c.l.b16 %v323
        %v395 = vunpack.c.l.b16 %v324
        %v396 = vunpack.c.l.b16 %v325
        %v397 = vunpack.c.l.b16 %v326
        %v398 = vunpack.c.l.b16 %v327
        %v399 = vunpack.c.l.b16 %v328
        %v400 = vunpack.c.l.b16 %v329
        %v401 = vunpack.c.l.b16 %v330
        %v402 = vunpack.c.l.b16 %v331
        %v403 = vunpack.c.l.b16 %v332
        %v404 = vunpack.c.l.b16 %v333
        %v405 = vunpack.c.l.b16 %v334
        %v406 = vunpack.c.l.b16 %v335
        %v407 = vpack.c.b16 %v376, %v375
        %v408 = vpack.c.b16 %v378, %v377
        %v409 = vpack.c.b16 %v380, %v379
        %v410 = vpack.c.b16 %v382, %v381
        %v411 = vpack.c.b16 %v384, %v383
        %v412 = vpack.c.b16 %v386, %v385
        %v413 = vpack.c.b16 %v388, %v387
        %v414 = vpack.c.b16 %v390, %v389
        %v415 = vpack.c.b16 %v392, %v391
        %v416 = vpack.c.b16 %v394, %v393
        %v417 = vpack.c.b16 %v396, %v395
        %v418 = vpack.c.b16 %v398, %v397
        %v419 = vpack.c.b16 %v400, %v399
        %v420 = vpack.c.b16 %v402, %v401
        %v421 = vpack.c.b16 %v404, %v403
        %v422 = vpack.c.b16 %v406, %v405
        %439 = vmatprep.subr.bf16.mxu0 0
        %440 = vmatpush1.bf16.msra.mxu0 %v414
        %441 = vmatprep.subr.bf16.mxu0 0
        %442 = vmatpush1.bf16.msra.mxu0 %v413
        %443 = vmatprep.subr.bf16.mxu0 0
        %444 = vmatpush1.bf16.msra.mxu0 %v412
        %445 = vmatprep.subr.bf16.mxu0 0
        %446 = vmatpush1.bf16.msra.mxu0 %v411
        %447 = vmatprep.subr.bf16.mxu0 0
        %448 = vmatpush1.bf16.msra.mxu0 %v410
        %449 = vmatprep.subr.bf16.mxu0 0
        %450 = vmatpush1.bf16.msra.mxu0 %v409
        %451 = vmatprep.subr.bf16.mxu0 0
        %452 = vmatpush1.bf16.msra.mxu0 %v408
        %453 = vmatprep.subr.bf16.mxu0 0
        %454 = vmatpush1.bf16.msra.mxu0 %v407
        %455 = vmatprep.subr.bf16.mxu0 0
        %456 = vmatpush2.bf16.msra.mxu0 %v422
        %457 = vmatprep.subr.bf16.mxu0 0
        %458 = vmatpush2.bf16.msra.mxu0 %v421
        %459 = vmatprep.subr.bf16.mxu0 0
        %460 = vmatpush2.bf16.msra.mxu0 %v420
        %461 = vmatprep.subr.bf16.mxu0 0
        %462 = vmatpush2.bf16.msra.mxu0 %v419
        %463 = vmatprep.subr.bf16.mxu0 0
        %464 = vmatpush2.bf16.msra.mxu0 %v418
        %465 = vmatprep.subr.bf16.mxu0 0
        %466 = vmatpush2.bf16.msra.mxu0 %v417
        %467 = vmatprep.subr.bf16.mxu0 0
        %468 = vmatpush2.bf16.msra.mxu0 %v416
        %469 = vmatprep.subr.bf16.mxu0 0
        %470 = vmatpush2.bf16.msra.mxu0 %v415
        %471 = vmatprep.mubr.bf16.mxu0 %v340
        %472 = vmatmul.mubr.bf16.gmra.mxu0 %v339
        %v473 = vpop.f32.mrf.mxu0
        %v474 = vadd.f32 0.0, %v473
        %v475 = vpop.f32.mrf.mxu0
        %v476 = vpop.f32.mrf.mxu0
        %v477 = vpop.f32.mrf.mxu0
        %478 = vdwg.mxu0
        %v479 = vadd.f32 %v302, %v474
        %480 = vst [vmem:[#allocation2] sm:$0xff] %v479
        // Predicated region
        $region57: #{tpu_custom_call.1} parent=39 // pred_check
          %p481 = pneg %p297
        $region58: #{tpu_custom_call.1} parent=39 // pred_check_branch
          %483 = sbr.rel (%p481) target = $region60
        $region59: #{tpu_custom_call.1} parent=39 // pred_region
          %v484 = vld [vmem:[#allocation2] sm:$0xff]
          %v485 = vld [vmem:[%s2] sm:$0x1]
          %v487 = vlaneseq
          %v488 = vshrl.u32 %v487, 7
          %v489 = vsub.s32 0, %v488
          %v490 = vrot.slane %v485, %v489
          %v492 = vadd.f32 %v484, %v490
          %v493 = vmax.f32 %v492, 0.0
          %494 = vst [vmem:[#allocation2] sm:$0xff] %v493
          %v495 = vld [vmem:[#allocation2] sm:$0xff]
          %v496 = vpack.c.bf16 %v495, %v495
          %v497 = vld [vmem:[#allocation8] sm:$0xf]
          %v498 = vld [vmem:[#allocation8 + $0x4] sm:$0xf]
          %v499 = vld [vmem:[#allocation8 + $0x8] sm:$0xf]
          %v500 = vld [vmem:[#allocation8 + $0xc] sm:$0xf]
          %v501 = vld [vmem:[#allocation8 + $0x10] sm:$0xf]
          %v502 = vld [vmem:[#allocation8 + $0x14] sm:$0xf]
          %v503 = vld [vmem:[#allocation8 + $0x18] sm:$0xf]
          %v504 = vld [vmem:[#allocation8 + $0x1c] sm:$0xf]
          %v505 = vld [vmem:[#allocation8 + $0x20] sm:$0xf]
          %v506 = vld [vmem:[#allocation8 + $0x24] sm:$0xf]
          %v507 = vld [vmem:[#allocation8 + $0x28] sm:$0xf]
          %v508 = vld [vmem:[#allocation8 + $0x2c] sm:$0xf]
          %v509 = vld [vmem:[#allocation8 + $0x30] sm:$0xf]
          %v510 = vld [vmem:[#allocation8 + $0x34] sm:$0xf]
          %v511 = vld [vmem:[#allocation8 + $0x38] sm:$0xf]
          %v512 = vld [vmem:[#allocation8 + $0x3c] sm:$0xf]
          %v513 = vld [vmem:[%s4] sm:$0x1]
          %v515 = vlaneseq
          %v516 = vshrl.u32 %v515, 7
          %v517 = vsub.s32 0, %v516
          %v518 = vrot.slane %v513, %v517
          %v536 = vunpack.c.l.b16 %v497
          %v537 = vunpack.c.l.b16 %v498
          %v538 = vunpack.c.l.b16 %v499
          %v539 = vunpack.c.l.b16 %v500
          %v540 = vunpack.c.l.b16 %v501
          %v541 = vunpack.c.l.b16 %v502
          %v542 = vunpack.c.l.b16 %v503
          %v543 = vunpack.c.l.b16 %v504
          %v544 = vunpack.c.l.b16 %v505
          %v545 = vunpack.c.l.b16 %v506
          %v546 = vunpack.c.l.b16 %v507
          %v547 = vunpack.c.l.b16 %v508
          %v548 = vunpack.c.l.b16 %v509
          %v549 = vunpack.c.l.b16 %v510
          %v550 = vunpack.c.l.b16 %v511
          %v551 = vunpack.c.l.b16 %v512
          %v552 = vpack.c.b16 %v537, %v536
          %v553 = vpack.c.b16 %v539, %v538
          %v554 = vpack.c.b16 %v541, %v540
          %v555 = vpack.c.b16 %v543, %v542
          %v556 = vpack.c.b16 %v545, %v544
          %v557 = vpack.c.b16 %v547, %v546
          %v558 = vpack.c.b16 %v549, %v548
          %v559 = vpack.c.b16 %v551, %v550
          %568 = vmatprep.subr.bf16.mxu0 0
          %569 = vmatpush1.bf16.msra.mxu0 %v559
          %570 = vmatprep.subr.bf16.mxu0 0
          %571 = vmatpush1.bf16.msra.mxu0 %v558
          %572 = vmatprep.subr.bf16.mxu0 0
          %573 = vmatpush1.bf16.msra.mxu0 %v557
          %574 = vmatprep.subr.bf16.mxu0 0
          %575 = vmatpush1.bf16.msra.mxu0 %v556
          %576 = vmatprep.subr.bf16.mxu0 0
          %577 = vmatpush1.bf16.msra.mxu0 %v555
          %578 = vmatprep.subr.bf16.mxu0 0
          %579 = vmatpush1.bf16.msra.mxu0 %v554
          %580 = vmatprep.subr.bf16.mxu0 0
          %581 = vmatpush1.bf16.msra.mxu0 %v553
          %582 = vmatprep.subr.bf16.mxu0 0
          %583 = vmatpush1.bf16.msra.mxu0 %v552
          %584 = vmatprep.subr.bf16.mxu0 0
          %585 = vmatpush2.bf16.msra.mxu0 0
          %586 = vmatprep.subr.bf16.mxu0 0
          %587 = vmatpush2.bf16.msra.mxu0 0
          %588 = vmatprep.subr.bf16.mxu0 0
          %589 = vmatpush2.bf16.msra.mxu0 0
          %590 = vmatprep.subr.bf16.mxu0 0
          %591 = vmatpush2.bf16.msra.mxu0 0
          %592 = vmatprep.subr.bf16.mxu0 0
          %593 = vmatpush2.bf16.msra.mxu0 0
          %594 = vmatprep.subr.bf16.mxu0 0
          %595 = vmatpush2.bf16.msra.mxu0 0
          %596 = vmatprep.subr.bf16.mxu0 0
          %597 = vmatpush2.bf16.msra.mxu0 0
          %598 = vmatprep.subr.bf16.mxu0 0
          %599 = vmatpush2.bf16.msra.mxu0 0
          %600 = vmatprep.mubr.bf16.mxu0 0
          %601 = vmatmul.mubr.bf16.gmra.mxu0 %v496
          %v602 = vpop.f32.mrf.mxu0
          %v603 = vadd.f32 %v518, %v602
          %v604 = vpop.f32.mrf.mxu0
          %v605 = vpop.f32.mrf.mxu0
          %v606 = vpop.f32.mrf.mxu0
          %607 = vdwg.mxu0
          %608 = vmax.xlane.f32.xlu0 %v603
          %v609 = vpop.xlane.xlu0 %608
          %v610 = vsub.f32 %v603, %v609
          %v611 = vmul.f32 %v610, 1.442695
          %v612 = vpow.pop %v611
          %613 = vadd.xlane.f32.xlu0 %v612
          %v614 = vpop.xlane.xlu0 %613
          %v615 = vlog2.pop %v614
          %v616 = vmul.f32 %v615, 0.6931472
          %v617 = vadd.f32 %v616, %v609
          %v618 = vsub.f32 %v603, %v617
          %619 = vst [vmem:[%s293] sm:$0xff] %v618
        $region60: #{tpu_custom_call.1} parent=39 // pred_fallthru
          _
        %s620 = sand.u32 %s160, 1
        %s621 = scalar_lea.sflag [#allocation5], %s620
        %s622 = sand.u32 %s160, 1
        %s623 = smul.addr %s622, 8
        %s624 = scalar_lea.vmem [#allocation9], %s623
        // Predicated region
        $region61: #{tpu_custom_call.1} parent=39 // pred_check
          %p625 = pneg %p170
        $region62: #{tpu_custom_call.1} parent=39 // pred_check_branch
          %627 = sbr.rel (%p625) target = $region64
        $region63: #{tpu_custom_call.1} parent=39 // pred_region
          %s629 = ssub.s32 128, 128
          %630 = vsyncadd %s621, %s629
          %s631 = smul.addr %s27, 128
          %s632 = scalar_lea.hbm %s5, %s631
          %s634 = sshll.u32 %s624, 4
          %s635 = int_to_ptr.vmem [resolvable:$true] %s634
          %637 = dma.vmem_to_hbm [thread:$0]  %s635, 128, %s632, %s621
        $region64: #{tpu_custom_call.1} parent=39 // pred_fallthru
          _
      $region40: #{tpu_custom_call.1} parent=5 // pred_fallthru
        _
      %p638 = scmp.le.s32.totalorder 2, %s18
      // Predicated region
      $region65: #{tpu_custom_call.1} parent=5 // pred_check
        %p639 = pneg %p638
      $region66: #{tpu_custom_call.1} parent=5 // pred_check_branch
        %641 = sbr.rel (%p639) target = $region68
      $region67: #{tpu_custom_call.1} parent=5 // pred_region
        %s642 = ssub.s32 %s18, 2
        // Predicated region
        $region69: #{tpu_custom_call.1} parent=67 // pred_check
          %p643 = pneg %p176
        $region70: #{tpu_custom_call.1} parent=67 // pred_check_branch
          %645 = sbr.rel (%p643) target = $region72
        $region71: #{tpu_custom_call.1} parent=67 // pred_region
          %s646 = sand.u32 %s161, 1
          %s647 = scalar_lea.sflag [#allocation5], %s646
          %s648 = sand.u32 %s161, 1
          %s649 = smul.addr %s648, 8
          %s650 = scalar_lea.vmem [#allocation9], %s649
          %651 = dma.done %s647, 128
        $region72: #{tpu_custom_call.1} parent=67 // pred_fallthru
          _
      $region68: #{tpu_custom_call.1} parent=5 // pred_fallthru
        _
    $region6: #{tpu_custom_call.1} parent=1 // loop_footer
      %s22 = sadd.s32 1, %s18
    $region7: #{tpu_custom_call.1} parent=1 // loop_footer_branch
      %17 = sbr.rel target = $region3
    $region8: #{tpu_custom_call.1} parent=1 // loop_exit
      _
    %652 = vsyncpa [#allocation4], 1
    %s653 = scalar_lea.sflag [#allocation4], 1
    %654 = vsyncpa %s653, 1
    %655 = vsyncpa [#allocation7], 1
    %656 = vsyncpa [#allocation5], 1
    %s657 = scalar_lea.sflag [#allocation5], 1
    %658 = vsyncpa %s657, 1

</llo_original>
